<compile_context>
chip_gen: v7x
topology: tpu7x:2x2x1
jax: 0.10.0
libtpu: 0.0.40
codegen_flags: <defaults>
</compile_context>

<pallas_src>
import jax
import jax.numpy as jnp
from jax.experimental import pallas as pl
from jax.experimental.pallas import tpu as pltpu

LANE = 128   # lane width / MXU-friendly padding
TM = 128     # node-row tile


def _round_up(x, m):
    return ((x + m - 1) // m) * m


# ----------------------------------------------------------------------------
# Stage 1 kernel: hw = (leaky_relu((A_rowblk @ X) @ W1 + b1)) @ W2
#   a_ref : (tm, Np)  bf16    x_ref : (Np, Fp) bf16    w1_ref: (Fp, Hp) bf16
#   b1_ref: (1, Hp)   f32     w2_ref: (Hp, Cp) bf16    hw_ref: (tm, Cp) bf16
# ----------------------------------------------------------------------------
def gcn_stage1_kernel(a_ref, x_ref, w1_ref, b1_ref, w2_ref, hw_ref):
    # (A @ X) @ W1 ordering: the N^2 matmul's inner/output width is F_in, not
    # hidden, which is the cheaper order when F_in < hidden.
    ax = jnp.dot(a_ref[...], x_ref[...], preferred_element_type=jnp.float32)
    h1 = jnp.dot(ax.astype(jnp.bfloat16), w1_ref[...],
                 preferred_element_type=jnp.float32)
    h1 = h1 + b1_ref[...]
    # F.leaky_relu (default negative_slope = 0.01), f32 on the VPU
    h1 = jnp.where(h1 > 0, h1, 0.01 * h1)
    # F.dropout(p=0.3, training=False) -> identity in eval mode
    hw = jnp.dot(h1.astype(jnp.bfloat16), w2_ref[...],
                 preferred_element_type=jnp.float32)
    hw_ref[...] = hw.astype(hw_ref.dtype)


# ----------------------------------------------------------------------------
# Stage 2 kernel: h2 = leaky_relu(A_rowblk @ hw + b2); pred = softmax(h2@Wc+bc)
#   a_ref : (tm, Np) bf16   hw_ref: (Np, Cp) bf16   b2_ref: (1, Cp) f32
#   wc_ref: (Cp, NCp) bf16  bc_ref: (1, NCp) f32 (padded classes = -1e30)
#   feat_ref: (tm, Cp) f32  pred_ref: (tm, NCp) f32
# ----------------------------------------------------------------------------
def gcn_stage2_kernel(a_ref, hw_ref, b2_ref, wc_ref, bc_ref, feat_ref, pred_ref):
    h2 = jnp.dot(a_ref[...], hw_ref[...], preferred_element_type=jnp.float32)
    h2 = h2 + b2_ref[...]
    h2 = jnp.where(h2 > 0, h2, 0.01 * h2)
    feat_ref[...] = h2.astype(feat_ref.dtype)          # output_feat

    logits = jnp.dot(h2.astype(jnp.bfloat16), wc_ref[...],
                     preferred_element_type=jnp.float32) + bc_ref[...]
    # padded class lanes carry bias -1e30 -> exp() == 0, so they do not
    # perturb the max or the normalization.
    m = jnp.max(logits, axis=-1, keepdims=True)
    e = jnp.exp(logits - m)
    denom = jnp.sum(e, axis=-1, keepdims=True)
    pred_ref[...] = (e * pl.reciprocal(denom, approx=True)).astype(pred_ref.dtype)


# ----------------------------------------------------------------------------
# Glue: dense symmetric-normalized adjacency (PyG gcn_norm semantics)
# ----------------------------------------------------------------------------
def gcn_normalized_adjacency(edge_index, num_nodes):
    """Dense D^{-1/2} (A + I) D^{-1/2}, out[dst] += norm * x[src]."""
    src, dst = edge_index[0], edge_index[1]
    a_hat = jnp.zeros((num_nodes, num_nodes), jnp.float32)
    a_hat = a_hat.at[src, dst].add(1.0)
    a_hat = a_hat + jnp.eye(num_nodes, dtype=jnp.float32)     # self loops
    deg = jnp.sum(a_hat, axis=0)                              # in-degree per node
    d_inv_sqrt = jnp.where(deg > 0, 1.0 / jnp.sqrt(deg), 0.0)
    return d_inv_sqrt[:, None] * a_hat.T * d_inv_sqrt[None, :]


def _pad2(arr, shape, dtype, fill=0.0):
    out = jnp.full(shape, fill, dtype)
    return out.at[: arr.shape[0], : arr.shape[1]].set(arr.astype(dtype))


# ----------------------------------------------------------------------------
# Forward wrapper
# ----------------------------------------------------------------------------
def graphnet_forward(x, edge_index, params, *, tm=TM):
    n, f_in = x.shape
    hidden = params["w1"].shape[1]
    out_channels = params["w2"].shape[1]
    num_classes = params["wc"].shape[1]

    n_pad = _round_up(n, tm)
    f_pad = _round_up(f_in, LANE)
    h_pad = _round_up(hidden, LANE)
    c_pad = _round_up(out_channels, LANE)
    nc_pad = _round_up(num_classes, LANE)

    # Dense normalized adjacency; pad and cast the big operand to bf16.
    a_norm = gcn_normalized_adjacency(edge_index, n)
    a_p = _pad2(a_norm, (n_pad, n_pad), jnp.bfloat16)
    x_p = _pad2(x, (n_pad, f_pad), jnp.bfloat16)
    w1_p = _pad2(params["w1"], (f_pad, h_pad), jnp.bfloat16)
    b1_p = _pad2(params["b1"], (1, h_pad), jnp.float32)
    w2_p = _pad2(params["w2"], (h_pad, c_pad), jnp.bfloat16)
    b2_p = _pad2(params["b2"], (1, c_pad), jnp.float32)
    wc_p = _pad2(params["wc"], (c_pad, nc_pad), jnp.bfloat16)
    # Padded class lanes get a huge negative bias so softmax ignores them.
    bc_p = _pad2(params["bc"], (1, nc_pad), jnp.float32, fill=-1e30)

    grid = (n_pad // tm,)
    cparams = pltpu.CompilerParams(
        dimension_semantics=("parallel",),        # node-row blocks independent
        vmem_limit_bytes=48 * 1024 * 1024,        # safe on v7x (64 MiB VMEM)
    )

    # ---- stage 1: hw = leaky_relu((A @ X) @ W1 + b1) @ W2 -----------------
    cost1 = pl.CostEstimate(
        flops=2 * n_pad * n_pad * f_pad
              + 2 * n_pad * f_pad * h_pad
              + 2 * n_pad * h_pad * c_pad,
        transcendentals=0,
        bytes_accessed=2 * n_pad * n_pad + 2 * n_pad * f_pad
                       + 2 * f_pad * h_pad + 4 * h_pad
                       + 2 * h_pad * c_pad + 2 * n_pad * c_pad,
    )
    hw = pl.pallas_call(
        gcn_stage1_kernel,
        out_shape=jax.ShapeDtypeStruct((n_pad, c_pad), jnp.bfloat16),
        grid=grid,
        in_specs=[
            pl.BlockSpec((tm, n_pad), lambda i: (i, 0)),      # A row block
            pl.BlockSpec((n_pad, f_pad), lambda i: (0, 0)),   # X (resident)
            pl.BlockSpec((f_pad, h_pad), lambda i: (0, 0)),   # W1
            pl.BlockSpec((1, h_pad), lambda i: (0, 0)),       # b1
            pl.BlockSpec((h_pad, c_pad), lambda i: (0, 0)),   # W2
        ],
        out_specs=pl.BlockSpec((tm, c_pad), lambda i: (i, 0)),
        compiler_params=cparams,
        cost_estimate=cost1,
    )(a_p, x_p, w1_p, b1_p, w2_p)

    # ---- stage 2: feat = leaky_relu(A @ hw + b2); pred = softmax(...) -----
    cost2 = pl.CostEstimate(
        flops=2 * n_pad * n_pad * c_pad + 2 * n_pad * c_pad * nc_pad,
        transcendentals=n_pad * nc_pad,
        bytes_accessed=2 * n_pad * n_pad + 2 * n_pad * c_pad
                       + 2 * c_pad * nc_pad + 4 * nc_pad + 4 * c_pad
                       + 4 * n_pad * c_pad + 4 * n_pad * nc_pad,
    )
    feat_p, pred_p = pl.pallas_call(
        gcn_stage2_kernel,
        out_shape=(jax.ShapeDtypeStruct((n_pad, c_pad), jnp.float32),
                   jax.ShapeDtypeStruct((n_pad, nc_pad), jnp.float32)),
        grid=grid,
        in_specs=[
            pl.BlockSpec((tm, n_pad), lambda i: (i, 0)),      # A row block
            pl.BlockSpec((n_pad, c_pad), lambda i: (0, 0)),   # hw (resident)
            pl.BlockSpec((1, c_pad), lambda i: (0, 0)),       # b2
            pl.BlockSpec((c_pad, nc_pad), lambda i: (0, 0)),  # Wc
            pl.BlockSpec((1, nc_pad), lambda i: (0, 0)),      # bc
        ],
        out_specs=(pl.BlockSpec((tm, c_pad), lambda i: (i, 0)),
                   pl.BlockSpec((tm, nc_pad), lambda i: (i, 0))),
        compiler_params=cparams,
        cost_estimate=cost2,
    )(a_p, hw, b2_p, wc_p, bc_p)

    # Strip padding (free relative to the kernel).
    return feat_p[:n, :out_channels], pred_p[:n, :num_classes]


# ----------------------------------------------------------------------------
# Pure-JAX f32 reference (for a loose correctness check)
# ----------------------------------------------------------------------------
def graphnet_reference(x, edge_index, params):
    a = gcn_normalized_adjacency(edge_index, x.shape[0])
    h1 = a @ (x @ params["w1"]) + params["b1"]
    h1 = jnp.where(h1 > 0, h1, 0.01 * h1)
    h2 = a @ (h1 @ params["w2"]) + params["b2"]
    h2 = jnp.where(h2 > 0, h2, 0.01 * h2)
    logits = h2 @ params["wc"] + params["bc"]
    return h2, jax.nn.softmax(logits, axis=1)


def init_params(key, num_node_features, out_channels, num_classes, hidden=64):
    ks = jax.random.split(key, 6)

    def glorot(k, fan_in, fan_out):
        s = jnp.sqrt(6.0 / (fan_in + fan_out))
        return jax.random.uniform(k, (fan_in, fan_out), jnp.float32, -s, s)

    return {
        "w1": glorot(ks[0], num_node_features, hidden),
        "b1": jnp.zeros((1, hidden), jnp.float32),
        "w2": glorot(ks[1], hidden, out_channels),
        "b2": jnp.zeros((1, out_channels), jnp.float32),
        # nn.Linear weight is [num_classes, out_channels]; stored pre-transposed.
        "wc": glorot(ks[2], out_channels, num_classes),
        "bc": jax.random.uniform(ks[3], (1, num_classes), jnp.float32, -0.1, 0.1),
    }


if __name__ == "__main__":
    # Small deterministic problem: 16 nodes, 16 input features,
    # out_channels=32, num_classes=8, 40 random directed edges.
    N, F_IN, OUT, NC, E = 16, 16, 32, 8, 40
    key = jax.random.PRNGKey(0)
    k_x, k_e, k_p = jax.random.split(key, 3)

    x = jax.random.normal(k_x, (N, F_IN), jnp.float32)
    edge_index = jax.random.randint(k_e, (2, E), 0, N, dtype=jnp.int32)
    params = init_params(k_p, F_IN, OUT, NC)

    feat, pred = graphnet_forward(x, edge_index, params)
    jax.block_until_ready((feat, pred))

    assert feat.shape == (N, OUT) and pred.shape == (N, NC)
    # softmax rows sum to ~1 (bf16 matmuls + approx reciprocal -> loose tol)
    assert jnp.allclose(jnp.sum(pred, axis=1), 1.0, atol=5e-3)

    # loose check vs f32 reference (kernel uses bf16 on the MXU)
    feat_ref, pred_ref = graphnet_reference(x, edge_index, params)
    assert jnp.max(jnp.abs(pred - pred_ref)) < 0.05
    assert jnp.max(jnp.abs(feat - feat_ref)) < 0.1

    print("KERNEL_OK")
</pallas_src>

<mosaic_0001>
module attributes {stable_mosaic.version = 11 : i64} {
  func.func @gcn_stage1_kernel(%arg0: i32, %arg1: memref<128x128xbf16, #tpu.memory_space<vmem>>, %arg2: memref<128x128xbf16, #tpu.memory_space<vmem>>, %arg3: memref<128x128xbf16, #tpu.memory_space<vmem>>, %arg4: memref<1x128xf32, #tpu.memory_space<vmem>>, %arg5: memref<128x128xbf16, #tpu.memory_space<vmem>>, %arg6: memref<128x128xbf16, #tpu.memory_space<vmem>>) attributes {dimension_semantics = [#tpu.dimension_semantics<parallel>], iteration_bounds = array<i64: 1>, scalar_prefetch = 0 : i64, scratch_operands = 0 : i64, tpu.core_type = #tpu.core_type<tc>, window_params = [{transform_indices = @transform_0, window_bounds = array<i64: 128, 128>}, {pipeline_mode = #tpu.pipeline_mode<synchronous>, transform_indices = @transform_1, window_bounds = array<i64: 128, 128>}, {pipeline_mode = #tpu.pipeline_mode<synchronous>, transform_indices = @transform_2, window_bounds = array<i64: 128, 128>}, {pipeline_mode = #tpu.pipeline_mode<synchronous>, transform_indices = @transform_3, window_bounds = array<i64: 1, 128>}, {pipeline_mode = #tpu.pipeline_mode<synchronous>, transform_indices = @transform_4, window_bounds = array<i64: 128, 128>}, {transform_indices = @transform_5, window_bounds = array<i64: 128, 128>}]} {
    %c0 = arith.constant 0 : index
    %c0_0 = arith.constant 0 : index
    %0 = vector.load %arg1[%c0, %c0_0] : memref<128x128xbf16, #tpu.memory_space<vmem>>, vector<128x128xbf16>
    %c0_1 = arith.constant 0 : index
    %c0_2 = arith.constant 0 : index
    %1 = vector.load %arg2[%c0_1, %c0_2] : memref<128x128xbf16, #tpu.memory_space<vmem>>, vector<128x128xbf16>
    %cst = arith.constant dense<0.000000e+00> : vector<128x128xf32>
    %2 = tpu.matmul %0, %1, %cst {dimension_numbers = #tpu.dot_dimension_numbers<[1], [0], [0], [1], [0, 0, 1, 1], [], []>} : vector<128x128xbf16>, vector<128x128xbf16>, vector<128x128xf32> -> vector<128x128xf32>
    %3 = arith.truncf %2 : vector<128x128xf32> to vector<128x128xbf16>
    %c0_3 = arith.constant 0 : index
    %c0_4 = arith.constant 0 : index
    %4 = vector.load %arg3[%c0_3, %c0_4] : memref<128x128xbf16, #tpu.memory_space<vmem>>, vector<128x128xbf16>
    %cst_5 = arith.constant dense<0.000000e+00> : vector<128x128xf32>
    %5 = tpu.matmul %3, %4, %cst_5 {dimension_numbers = #tpu.dot_dimension_numbers<[1], [0], [0], [1], [0, 0, 1, 1], [], []>} : vector<128x128xbf16>, vector<128x128xbf16>, vector<128x128xf32> -> vector<128x128xf32>
    %c0_6 = arith.constant 0 : index
    %c0_7 = arith.constant 0 : index
    %6 = vector.load %arg4[%c0_6, %c0_7] : memref<1x128xf32, #tpu.memory_space<vmem>>, vector<1x128xf32>
    %7 = vector.broadcast %6 : vector<1x128xf32> to vector<128x128xf32>
    %8 = arith.addf %5, %7 : vector<128x128xf32>
    %cst_8 = arith.constant 0.000000e+00 : f32
    %9 = vector.broadcast %cst_8 : f32 to vector<128x128xf32>
    %10 = arith.cmpf ogt, %8, %9 : vector<128x128xf32>
    %cst_9 = arith.constant 0.00999999977 : f32
    %11 = vector.broadcast %cst_9 : f32 to vector<128x128xf32>
    %12 = arith.mulf %11, %8 : vector<128x128xf32>
    %13 = arith.select %10, %8, %12 : vector<128x128xi1>, vector<128x128xf32>
    %14 = arith.truncf %13 : vector<128x128xf32> to vector<128x128xbf16>
    %c0_10 = arith.constant 0 : index
    %c0_11 = arith.constant 0 : index
    %15 = vector.load %arg5[%c0_10, %c0_11] : memref<128x128xbf16, #tpu.memory_space<vmem>>, vector<128x128xbf16>
    %cst_12 = arith.constant dense<0.000000e+00> : vector<128x128xf32>
    %16 = tpu.matmul %14, %15, %cst_12 {dimension_numbers = #tpu.dot_dimension_numbers<[1], [0], [0], [1], [0, 0, 1, 1], [], []>} : vector<128x128xbf16>, vector<128x128xbf16>, vector<128x128xf32> -> vector<128x128xf32>
    %17 = arith.truncf %16 : vector<128x128xf32> to vector<128x128xbf16>
    %c0_13 = arith.constant 0 : index
    %c0_14 = arith.constant 0 : index
    %18 = vector.load %arg6[%c0_13, %c0_14] : memref<128x128xbf16, #tpu.memory_space<vmem>>, vector<128x128xbf16>
    tpu.vector_store %arg6[%c0_13, %c0_14], %17 {strides = array<i32>} : memref<128x128xbf16, #tpu.memory_space<vmem>>, vector<128x128xbf16>,
    return
  }
  func.func @transform_0(%arg0: i32) -> (i32, i32) {
    %c0_i32 = arith.constant 0 : i32
    %c0_i32_0 = arith.constant 0 : i32
    return %arg0, %c0_i32 : i32, i32
  }
  func.func @transform_1(%arg0: i32) -> (i32, i32) {
    %c0_i32 = arith.constant 0 : i32
    %c0_i32_0 = arith.constant 0 : i32
    %c0_i32_1 = arith.constant 0 : i32
    return %c0_i32, %c0_i32_0 : i32, i32
  }
  func.func @transform_2(%arg0: i32) -> (i32, i32) {
    %c0_i32 = arith.constant 0 : i32
    %c0_i32_0 = arith.constant 0 : i32
    %c0_i32_1 = arith.constant 0 : i32
    return %c0_i32, %c0_i32_0 : i32, i32
  }
  func.func @transform_3(%arg0: i32) -> (i32, i32) {
    %c0_i32 = arith.constant 0 : i32
    %c0_i32_0 = arith.constant 0 : i32
    %c0_i32_1 = arith.constant 0 : i32
    return %c0_i32, %c0_i32_0 : i32, i32
  }
  func.func @transform_4(%arg0: i32) -> (i32, i32) {
    %c0_i32 = arith.constant 0 : i32
    %c0_i32_0 = arith.constant 0 : i32
    %c0_i32_1 = arith.constant 0 : i32
    return %c0_i32, %c0_i32_0 : i32, i32
  }
  func.func @transform_5(%arg0: i32) -> (i32, i32) {
    %c0_i32 = arith.constant 0 : i32
    %c0_i32_0 = arith.constant 0 : i32
    return %arg0, %c0_i32 : i32, i32
  }
}

</mosaic_0001>

<llo_original>
// kernel: tpu_custom_call.1
$region0: #{tpu_custom_call.1}
  #allocation0 [shape = 'u32[]', space=smem, size = 0x4, offset = 0x4, fixed_abs, tag = 'smem constant byte address 0x4 - core index']
  #allocation1 [shape = 'u32[144,128]{1,0:T(1,128)}', space=vmem, size = 0x12000, scoped, tag = 'internal scratch']
  %s0 = inlined_call_operand.hbm [shape: bf16[128,128], index: 0, kind: input, shape index: {}]
  %s1 = inlined_call_operand.hbm [shape: bf16[128,128], index: 1, kind: input, shape index: {}]
  %s2 = inlined_call_operand.hbm [shape: bf16[128,128], index: 2, kind: input, shape index: {}]
  %s3 = inlined_call_operand.vmem [shape: f32[1,128], index: 3, kind: input, shape index: {}]
  %s4 = inlined_call_operand.hbm [shape: bf16[128,128], index: 4, kind: input, shape index: {}]
  %s5 = inlined_call_operand.hbm [shape: bf16[128,128], index: 5, kind: output, shape index: {}]
  %s6 = sld [smem:[#allocation0]]
  $region46: #{tpu_custom_call.1} parent=0
    _
  %s8 = ssub.s32 1, %s6
  %s9 = scalar_select 0, %s8, %s6
  $region1: #{tpu_custom_call.1} parent=0
    #allocation2 [shape = 'u8[32768]{0}', space=vmem, size = 0x8000, scoped, tag = 'input window, operand 0, single buffered']
    #allocation3 [shape = 's32[1]{0}', space=sflag, size = 0x4, scoped, tag = 'scoped memory for tpu_custom_call.1']
    #allocation4 [shape = 's32[1]{0}', space=sflag, size = 0x4, scoped, tag = 'scoped memory for tpu_custom_call.1']
    #allocation5 [shape = 'u8[32768]{0}', space=vmem, size = 0x8000, scoped, tag = 'input window, operand 1, single buffered']
    #allocation6 [shape = 's32[1]{0}', space=sflag, size = 0x4, scoped, tag = 'scoped memory for tpu_custom_call.1']
    #allocation7 [shape = 'u8[32768]{0}', space=vmem, size = 0x8000, scoped, tag = 'input window, operand 2, single buffered']
    #allocation8 [shape = 'u8[32768]{0}', space=vmem, size = 0x8000, scoped, tag = 'input window, operand 4, single buffered']
    #allocation9 [shape = 's32[1]{0}', space=sflag, size = 0x4, scoped, tag = 'scoped memory for tpu_custom_call.1']
    #allocation10 [shape = 'u8[32768]{0}', space=vmem, size = 0x8000, scoped, tag = 'output window, operand 0, single buffered']
    %10 = vsyncpa [#allocation3], 0
    %11 = vsyncpa [#allocation6], 0
    %12 = vsyncpa [#allocation9], 0
    %13 = vsyncpa [#allocation4], 0
    // Predicated region
    $region2: #{tpu_custom_call.1} parent=1 // pred_check
      _
    $region3: #{tpu_custom_call.1} parent=1 // pred_check_branch
      %15 = sbr.rel (0) target = $region5
    $region4: #{tpu_custom_call.1} parent=1 // pred_region
      %s17 = ssub.s32 1024, 1024
      %18 = vsyncadd [#allocation3], %s17
      %s19 = sshll.u32 [#allocation2], 4
      %s20 = int_to_ptr.vmem [resolvable:$true] %s19
      %25 = dma.hbm_to_vmem [thread:$0]  %s0, 1024, %s20, [#allocation3], 64, 64, 4
    $region5: #{tpu_custom_call.1} parent=1 // pred_fallthru
      _
    // Predicated region
    $region6: #{tpu_custom_call.1} parent=1 // pred_check
      _
    $region7: #{tpu_custom_call.1} parent=1 // pred_check_branch
      %27 = sbr.rel (0) target = $region9
    $region8: #{tpu_custom_call.1} parent=1 // pred_region
      %s29 = ssub.s32 1024, 1024
      %30 = vsyncadd [#allocation6], %s29
      %s31 = sshll.u32 [#allocation5], 4
      %s32 = int_to_ptr.vmem [resolvable:$true] %s31
      %37 = dma.hbm_to_vmem [thread:$0]  %s1, 1024, %s32, [#allocation6], 64, 64, 4
    $region9: #{tpu_custom_call.1} parent=1 // pred_fallthru
      _
    // Predicated region
    $region10: #{tpu_custom_call.1} parent=1 // pred_check
      _
    $region11: #{tpu_custom_call.1} parent=1 // pred_check_branch
      %39 = sbr.rel (0) target = $region13
    $region12: #{tpu_custom_call.1} parent=1 // pred_region
      %s41 = ssub.s32 1024, 1024
      %42 = vsyncadd [#allocation6], %s41
      %s43 = sshll.u32 [#allocation7], 4
      %s44 = int_to_ptr.vmem [resolvable:$true] %s43
      %49 = dma.hbm_to_vmem [thread:$0]  %s2, 1024, %s44, [#allocation6], 64, 64, 4
    $region13: #{tpu_custom_call.1} parent=1 // pred_fallthru
      _
    // Predicated region
    $region14: #{tpu_custom_call.1} parent=1 // pred_check
      _
    $region15: #{tpu_custom_call.1} parent=1 // pred_check_branch
      %51 = sbr.rel (0) target = $region17
    $region16: #{tpu_custom_call.1} parent=1 // pred_region
      _
    $region17: #{tpu_custom_call.1} parent=1 // pred_fallthru
      _
    // Predicated region
    $region18: #{tpu_custom_call.1} parent=1 // pred_check
      _
    $region19: #{tpu_custom_call.1} parent=1 // pred_check_branch
      %53 = sbr.rel (0) target = $region21
    $region20: #{tpu_custom_call.1} parent=1 // pred_region
      %s55 = ssub.s32 1024, 1024
      %56 = vsyncadd [#allocation9], %s55
      %s57 = sshll.u32 [#allocation8], 4
      %s58 = int_to_ptr.vmem [resolvable:$true] %s57
      %63 = dma.hbm_to_vmem [thread:$0]  %s4, 1024, %s58, [#allocation9], 64, 64, 4
    $region21: #{tpu_custom_call.1} parent=1 // pred_fallthru
      _
    // Predicated region
    $region22: #{tpu_custom_call.1} parent=1 // pred_check
      _
    $region23: #{tpu_custom_call.1} parent=1 // pred_check_branch
      %65 = sbr.rel (0) target = $region25
    $region24: #{tpu_custom_call.1} parent=1 // pred_region
      %66 = dma.done [#allocation3], 1024
    $region25: #{tpu_custom_call.1} parent=1 // pred_fallthru
      _
    // Predicated region
    $region26: #{tpu_custom_call.1} parent=1 // pred_check
      _
    $region27: #{tpu_custom_call.1} parent=1 // pred_check_branch
      %68 = sbr.rel (0) target = $region29
    $region28: #{tpu_custom_call.1} parent=1 // pred_region
      %69 = dma.done [#allocation6], 1024
    $region29: #{tpu_custom_call.1} parent=1 // pred_fallthru
      _
    // Predicated region
    $region30: #{tpu_custom_call.1} parent=1 // pred_check
      _
    $region31: #{tpu_custom_call.1} parent=1 // pred_check_branch
      %71 = sbr.rel (0) target = $region33
    $region32: #{tpu_custom_call.1} parent=1 // pred_region
      %72 = dma.done [#allocation6], 1024
    $region33: #{tpu_custom_call.1} parent=1 // pred_fallthru
      _
    // Predicated region
    $region34: #{tpu_custom_call.1} parent=1 // pred_check
      _
    $region35: #{tpu_custom_call.1} parent=1 // pred_check_branch
      %74 = sbr.rel (0) target = $region37
    $region36: #{tpu_custom_call.1} parent=1 // pred_region
      %75 = dma.done [#allocation9], 1024
    $region37: #{tpu_custom_call.1} parent=1 // pred_fallthru
      _
    %v77 = vld [vmem:[#allocation2] sm:$0xf]
    %v78 = vld [vmem:[#allocation2 + $0x4] sm:$0xf]
    %v79 = vld [vmem:[#allocation2 + $0x8] sm:$0xf]
    %v80 = vld [vmem:[#allocation2 + $0xc] sm:$0xf]
    %v81 = vld [vmem:[#allocation2 + $0x10] sm:$0xf]
    %v82 = vld [vmem:[#allocation2 + $0x14] sm:$0xf]
    %v83 = vld [vmem:[#allocation2 + $0x18] sm:$0xf]
    %v84 = vld [vmem:[#allocation2 + $0x1c] sm:$0xf]
    %v85 = vld [vmem:[#allocation2 + $0x20] sm:$0xf]
    %v86 = vld [vmem:[#allocation2 + $0x24] sm:$0xf]
    %v87 = vld [vmem:[#allocation2 + $0x28] sm:$0xf]
    %v88 = vld [vmem:[#allocation2 + $0x2c] sm:$0xf]
    %v89 = vld [vmem:[#allocation2 + $0x30] sm:$0xf]
    %v90 = vld [vmem:[#allocation2 + $0x34] sm:$0xf]
    %v91 = vld [vmem:[#allocation2 + $0x38] sm:$0xf]
    %v92 = vld [vmem:[#allocation2 + $0x3c] sm:$0xf]
    %v93 = vld [vmem:[#allocation5] sm:$0xf]
    %v94 = vld [vmem:[#allocation5 + $0x4] sm:$0xf]
    %v95 = vld [vmem:[#allocation5 + $0x8] sm:$0xf]
    %v96 = vld [vmem:[#allocation5 + $0xc] sm:$0xf]
    %v97 = vld [vmem:[#allocation5 + $0x10] sm:$0xf]
    %v98 = vld [vmem:[#allocation5 + $0x14] sm:$0xf]
    %v99 = vld [vmem:[#allocation5 + $0x18] sm:$0xf]
    %v100 = vld [vmem:[#allocation5 + $0x1c] sm:$0xf]
    %v101 = vld [vmem:[#allocation5 + $0x20] sm:$0xf]
    %v102 = vld [vmem:[#allocation5 + $0x24] sm:$0xf]
    %v103 = vld [vmem:[#allocation5 + $0x28] sm:$0xf]
    %v104 = vld [vmem:[#allocation5 + $0x2c] sm:$0xf]
    %v105 = vld [vmem:[#allocation5 + $0x30] sm:$0xf]
    %v106 = vld [vmem:[#allocation5 + $0x34] sm:$0xf]
    %v107 = vld [vmem:[#allocation5 + $0x38] sm:$0xf]
    %v108 = vld [vmem:[#allocation5 + $0x3c] sm:$0xf]
    %v125 = vunpack.c.l.b16 %v77
    %v126 = vunpack.c.l.b16 %v78
    %v127 = vunpack.c.l.b16 %v79
    %v128 = vunpack.c.l.b16 %v80
    %v129 = vunpack.c.l.b16 %v81
    %v130 = vunpack.c.l.b16 %v82
    %v131 = vunpack.c.l.b16 %v83
    %v132 = vunpack.c.l.b16 %v84
    %v133 = vunpack.c.l.b16 %v85
    %v134 = vunpack.c.l.b16 %v86
    %v135 = vunpack.c.l.b16 %v87
    %v136 = vunpack.c.l.b16 %v88
    %v137 = vunpack.c.l.b16 %v89
    %v138 = vunpack.c.l.b16 %v90
    %v139 = vunpack.c.l.b16 %v91
    %v140 = vunpack.c.l.b16 %v92
    %v141 = vpack.c.b16 %v126, %v125
    %v142 = vpack.c.b16 %v128, %v127
    %v143 = vpack.c.b16 %v130, %v129
    %v144 = vpack.c.b16 %v132, %v131
    %v145 = vpack.c.b16 %v134, %v133
    %v146 = vpack.c.b16 %v136, %v135
    %v147 = vpack.c.b16 %v138, %v137
    %v148 = vpack.c.b16 %v140, %v139
    %v173 = vunpack.c.l.b16 %v93
    %v174 = vunpack.c.l.b16 %v94
    %v175 = vunpack.c.l.b16 %v95
    %v176 = vunpack.c.l.b16 %v96
    %v177 = vunpack.c.l.b16 %v97
    %v178 = vunpack.c.l.b16 %v98
    %v179 = vunpack.c.l.b16 %v99
    %v180 = vunpack.c.l.b16 %v100
    %v181 = vunpack.c.l.b16 %v101
    %v182 = vunpack.c.l.b16 %v102
    %v183 = vunpack.c.l.b16 %v103
    %v184 = vunpack.c.l.b16 %v104
    %v185 = vunpack.c.l.b16 %v105
    %v186 = vunpack.c.l.b16 %v106
    %v187 = vunpack.c.l.b16 %v107
    %v188 = vunpack.c.l.b16 %v108
    %v189 = vpack.c.b16 %v174, %v173
    %v190 = vpack.c.b16 %v176, %v175
    %v191 = vpack.c.b16 %v178, %v177
    %v192 = vpack.c.b16 %v180, %v179
    %v193 = vpack.c.b16 %v182, %v181
    %v194 = vpack.c.b16 %v184, %v183
    %v195 = vpack.c.b16 %v186, %v185
    %v196 = vpack.c.b16 %v188, %v187
    %205 = vmatprep.subr.bf16.mxu0 0
    %206 = vmatpush1.bf16.msra.mxu0 %v189
    %207 = vmatprep.subr.bf16.mxu0 0
    %208 = vmatpush1.bf16.msra.mxu0 %v190
    %209 = vmatprep.subr.bf16.mxu0 0
    %210 = vmatpush1.bf16.msra.mxu0 %v191
    %211 = vmatprep.subr.bf16.mxu0 0
    %212 = vmatpush1.bf16.msra.mxu0 %v192
    %213 = vmatprep.subr.bf16.mxu0 0
    %214 = vmatpush1.bf16.msra.mxu0 %v193
    %215 = vmatprep.subr.bf16.mxu0 0
    %216 = vmatpush1.bf16.msra.mxu0 %v194
    %217 = vmatprep.subr.bf16.mxu0 0
    %218 = vmatpush1.bf16.msra.mxu0 %v195
    %219 = vmatprep.subr.bf16.mxu0 0
    %220 = vmatpush1.bf16.msra.mxu0 %v196
    %221 = vmatprep.subr.bf16.mxu0 0
    %222 = vmatpush1.bf16.msra.mxu0 0
    %223 = vmatprep.subr.bf16.mxu0 0
    %224 = vmatpush1.bf16.msra.mxu0 0
    %225 = vmatprep.subr.bf16.mxu0 0
    %226 = vmatpush1.bf16.msra.mxu0 0
    %227 = vmatprep.subr.bf16.mxu0 0
    %228 = vmatpush1.bf16.msra.mxu0 0
    %229 = vmatprep.subr.bf16.mxu0 0
    %230 = vmatpush1.bf16.msra.mxu0 0
    %231 = vmatprep.subr.bf16.mxu0 0
    %232 = vmatpush1.bf16.msra.mxu0 0
    %233 = vmatprep.subr.bf16.mxu0 0
    %234 = vmatpush1.bf16.msra.mxu0 0
    %235 = vmatprep.subr.bf16.mxu0 0
    %236 = vmatpush1.bf16.msra.mxu0 0
    %237 = vmatprep.mubr.bf16.mxu0 0
    %238 = vmatmul.mubr.bf16.gmra.mrb[0].mxu0 %v141
    %v239 = vpop.f32.mrb[0].mxu0
    %v240 = vadd.f32 0.0, %v239
    %v241 = vpop.f32.mrb[0].mxu0
    %v242 = vpop.f32.mrb[0].mxu0
    %v243 = vadd.f32 0.0, %v242
    %v244 = vpop.f32.mrb[0].mxu0
    %245 = vmatprep.mubr.bf16.mxu0 0
    %246 = vmatmul.mubr.bf16.gmra.mrb[0].mxu0 %v142
    %v247 = vpop.f32.mrb[0].mxu0
    %v248 = vadd.f32 0.0, %v247
    %v249 = vpop.f32.mrb[0].mxu0
    %v250 = vpop.f32.mrb[0].mxu0
    %v251 = vadd.f32 0.0, %v250
    %v252 = vpop.f32.mrb[0].mxu0
    %253 = vmatprep.mubr.bf16.mxu0 0
    %254 = vmatmul.mubr.bf16.gmra.mrb[0].mxu0 %v143
    %v255 = vpop.f32.mrb[0].mxu0
    %v256 = vadd.f32 0.0, %v255
    %v257 = vpop.f32.mrb[0].mxu0
    %v258 = vpop.f32.mrb[0].mxu0
    %v259 = vadd.f32 0.0, %v258
    %v260 = vpop.f32.mrb[0].mxu0
    %261 = vmatprep.mubr.bf16.mxu0 0
    %262 = vmatmul.mubr.bf16.gmra.mrb[0].mxu0 %v144
    %v263 = vpop.f32.mrb[0].mxu0
    %v264 = vadd.f32 0.0, %v263
    %v265 = vpop.f32.mrb[0].mxu0
    %v266 = vpop.f32.mrb[0].mxu0
    %v267 = vadd.f32 0.0, %v266
    %v268 = vpop.f32.mrb[0].mxu0
    %269 = vmatprep.mubr.bf16.mxu0 0
    %270 = vmatmul.mubr.bf16.gmra.mrb[0].mxu0 %v145
    %v271 = vpop.f32.mrb[0].mxu0
    %v272 = vadd.f32 0.0, %v271
    %v273 = vpop.f32.mrb[0].mxu0
    %v274 = vpop.f32.mrb[0].mxu0
    %v275 = vadd.f32 0.0, %v274
    %v276 = vpop.f32.mrb[0].mxu0
    %277 = vmatprep.mubr.bf16.mxu0 0
    %278 = vmatmul.mubr.bf16.gmra.mrb[0].mxu0 %v146
    %v279 = vpop.f32.mrb[0].mxu0
    %v280 = vadd.f32 0.0, %v279
    %v281 = vpop.f32.mrb[0].mxu0
    %v282 = vpop.f32.mrb[0].mxu0
    %v283 = vadd.f32 0.0, %v282
    %v284 = vpop.f32.mrb[0].mxu0
    %285 = vmatprep.mubr.bf16.mxu0 0
    %286 = vmatmul.mubr.bf16.gmra.mrb[0].mxu0 %v147
    %v287 = vpop.f32.mrb[0].mxu0
    %v288 = vadd.f32 0.0, %v287
    %v289 = vpop.f32.mrb[0].mxu0
    %v290 = vpop.f32.mrb[0].mxu0
    %v291 = vadd.f32 0.0, %v290
    %v292 = vpop.f32.mrb[0].mxu0
    %293 = vmatprep.mubr.bf16.mxu0 0
    %294 = vmatmul.mubr.bf16.gmra.mrb[0].mxu0 %v148
    %v295 = vpop.f32.mrb[0].mxu0
    %v296 = vadd.f32 0.0, %v295
    %v297 = vpop.f32.mrb[0].mxu0
    %v298 = vpop.f32.mrb[0].mxu0
    %v299 = vadd.f32 0.0, %v298
    %v300 = vpop.f32.mrb[0].mxu0
    %301 = vdwg.mxu0
    %v302 = vpack.c.bf16 %v243, %v240
    %v303 = vpack.c.bf16 %v251, %v248
    %v304 = vpack.c.bf16 %v259, %v256
    %v305 = vpack.c.bf16 %v267, %v264
    %v306 = vpack.c.bf16 %v275, %v272
    %v307 = vpack.c.bf16 %v283, %v280
    %v308 = vpack.c.bf16 %v291, %v288
    %v309 = vpack.c.bf16 %v299, %v296
    %v310 = vld [vmem:[#allocation7] sm:$0xf]
    %v311 = vld [vmem:[#allocation7 + $0x4] sm:$0xf]
    %v312 = vld [vmem:[#allocation7 + $0x8] sm:$0xf]
    %v313 = vld [vmem:[#allocation7 + $0xc] sm:$0xf]
    %v314 = vld [vmem:[#allocation7 + $0x10] sm:$0xf]
    %v315 = vld [vmem:[#allocation7 + $0x14] sm:$0xf]
    %v316 = vld [vmem:[#allocation7 + $0x18] sm:$0xf]
    %v317 = vld [vmem:[#allocation7 + $0x1c] sm:$0xf]
    %v318 = vld [vmem:[#allocation7 + $0x20] sm:$0xf]
    %v319 = vld [vmem:[#allocation7 + $0x24] sm:$0xf]
    %v320 = vld [vmem:[#allocation7 + $0x28] sm:$0xf]
    %v321 = vld [vmem:[#allocation7 + $0x2c] sm:$0xf]
    %v322 = vld [vmem:[#allocation7 + $0x30] sm:$0xf]
    %v323 = vld [vmem:[#allocation7 + $0x34] sm:$0xf]
    %v324 = vld [vmem:[#allocation7 + $0x38] sm:$0xf]
    %v325 = vld [vmem:[#allocation7 + $0x3c] sm:$0xf]
    %v326 = vld [vmem:[%s3] sm:$0x1]
    %v328 = vlaneseq
    %v329 = vshrl.u32 %v328, 7
    %v330 = vsub.s32 0, %v329
    %v331 = vrot.slane %v326, %v330
    %v349 = vunpack.c.l.b16 %v310
    %v350 = vunpack.c.l.b16 %v311
    %v351 = vunpack.c.l.b16 %v312
    %v352 = vunpack.c.l.b16 %v313
    %v353 = vunpack.c.l.b16 %v314
    %v354 = vunpack.c.l.b16 %v315
    %v355 = vunpack.c.l.b16 %v316
    %v356 = vunpack.c.l.b16 %v317
    %v357 = vunpack.c.l.b16 %v318
    %v358 = vunpack.c.l.b16 %v319
    %v359 = vunpack.c.l.b16 %v320
    %v360 = vunpack.c.l.b16 %v321
    %v361 = vunpack.c.l.b16 %v322
    %v362 = vunpack.c.l.b16 %v323
    %v363 = vunpack.c.l.b16 %v324
    %v364 = vunpack.c.l.b16 %v325
    %v365 = vpack.c.b16 %v350, %v349
    %v366 = vpack.c.b16 %v352, %v351
    %v367 = vpack.c.b16 %v354, %v353
    %v368 = vpack.c.b16 %v356, %v355
    %v369 = vpack.c.b16 %v358, %v357
    %v370 = vpack.c.b16 %v360, %v359
    %v371 = vpack.c.b16 %v362, %v361
    %v372 = vpack.c.b16 %v364, %v363
    %381 = vmatprep.subr.bf16.mxu0 0
    %382 = vmatpush1.bf16.msra.mxu0 %v365
    %383 = vmatprep.subr.bf16.mxu0 0
    %384 = vmatpush1.bf16.msra.mxu0 %v366
    %385 = vmatprep.subr.bf16.mxu0 0
    %386 = vmatpush1.bf16.msra.mxu0 %v367
    %387 = vmatprep.subr.bf16.mxu0 0
    %388 = vmatpush1.bf16.msra.mxu0 %v368
    %389 = vmatprep.subr.bf16.mxu0 0
    %390 = vmatpush1.bf16.msra.mxu0 %v369
    %391 = vmatprep.subr.bf16.mxu0 0
    %392 = vmatpush1.bf16.msra.mxu0 %v370
    %393 = vmatprep.subr.bf16.mxu0 0
    %394 = vmatpush1.bf16.msra.mxu0 %v371
    %395 = vmatprep.subr.bf16.mxu0 0
    %396 = vmatpush1.bf16.msra.mxu0 %v372
    %397 = vmatprep.subr.bf16.mxu0 0
    %398 = vmatpush1.bf16.msra.mxu0 0
    %399 = vmatprep.subr.bf16.mxu0 0
    %400 = vmatpush1.bf16.msra.mxu0 0
    %401 = vmatprep.subr.bf16.mxu0 0
    %402 = vmatpush1.bf16.msra.mxu0 0
    %403 = vmatprep.subr.bf16.mxu0 0
    %404 = vmatpush1.bf16.msra.mxu0 0
    %405 = vmatprep.subr.bf16.mxu0 0
    %406 = vmatpush1.bf16.msra.mxu0 0
    %407 = vmatprep.subr.bf16.mxu0 0
    %408 = vmatpush1.bf16.msra.mxu0 0
    %409 = vmatprep.subr.bf16.mxu0 0
    %410 = vmatpush1.bf16.msra.mxu0 0
    %411 = vmatprep.subr.bf16.mxu0 0
    %412 = vmatpush1.bf16.msra.mxu0 0
    %413 = vmatprep.mubr.bf16.mxu0 0
    %414 = vmatmul.mubr.bf16.gmra.mrb[0].mxu0 %v302
    %v415 = vpop.f32.mrb[0].mxu0
    %v416 = vadd.f32 %v331, %v415
    %v417 = vpop.f32.mrb[0].mxu0
    %v418 = vpop.f32.mrb[0].mxu0
    %v419 = vadd.f32 %v331, %v418
    %v420 = vpop.f32.mrb[0].mxu0
    %421 = vmatprep.mubr.bf16.mxu0 0
    %422 = vmatmul.mubr.bf16.gmra.mrb[0].mxu0 %v303
    %v423 = vpop.f32.mrb[0].mxu0
    %v424 = vadd.f32 %v331, %v423
    %v425 = vpop.f32.mrb[0].mxu0
    %v426 = vpop.f32.mrb[0].mxu0
    %v427 = vadd.f32 %v331, %v426
    %v428 = vpop.f32.mrb[0].mxu0
    %429 = vmatprep.mubr.bf16.mxu0 0
    %430 = vmatmul.mubr.bf16.gmra.mrb[0].mxu0 %v304
    %v431 = vpop.f32.mrb[0].mxu0
    %v432 = vadd.f32 %v331, %v431
    %v433 = vpop.f32.mrb[0].mxu0
    %v434 = vpop.f32.mrb[0].mxu0
    %v435 = vadd.f32 %v331, %v434
    %v436 = vpop.f32.mrb[0].mxu0
    %437 = vmatprep.mubr.bf16.mxu0 0
    %438 = vmatmul.mubr.bf16.gmra.mrb[0].mxu0 %v305
    %v439 = vpop.f32.mrb[0].mxu0
    %v440 = vadd.f32 %v331, %v439
    %v441 = vpop.f32.mrb[0].mxu0
    %v442 = vpop.f32.mrb[0].mxu0
    %v443 = vadd.f32 %v331, %v442
    %v444 = vpop.f32.mrb[0].mxu0
    %445 = vmatprep.mubr.bf16.mxu0 0
    %446 = vmatmul.mubr.bf16.gmra.mrb[0].mxu0 %v306
    %v447 = vpop.f32.mrb[0].mxu0
    %v448 = vadd.f32 %v331, %v447
    %v449 = vpop.f32.mrb[0].mxu0
    %v450 = vpop.f32.mrb[0].mxu0
    %v451 = vadd.f32 %v331, %v450
    %v452 = vpop.f32.mrb[0].mxu0
    %453 = vmatprep.mubr.bf16.mxu0 0
    %454 = vmatmul.mubr.bf16.gmra.mrb[0].mxu0 %v307
    %v455 = vpop.f32.mrb[0].mxu0
    %v456 = vadd.f32 %v331, %v455
    %v457 = vpop.f32.mrb[0].mxu0
    %v458 = vpop.f32.mrb[0].mxu0
    %v459 = vadd.f32 %v331, %v458
    %v460 = vpop.f32.mrb[0].mxu0
    %461 = vmatprep.mubr.bf16.mxu0 0
    %462 = vmatmul.mubr.bf16.gmra.mrb[0].mxu0 %v308
    %v463 = vpop.f32.mrb[0].mxu0
    %v464 = vadd.f32 %v331, %v463
    %v465 = vpop.f32.mrb[0].mxu0
    %v466 = vpop.f32.mrb[0].mxu0
    %v467 = vadd.f32 %v331, %v466
    %v468 = vpop.f32.mrb[0].mxu0
    %469 = vmatprep.mubr.bf16.mxu0 0
    %470 = vmatmul.mubr.bf16.gmra.mrb[0].mxu0 %v309
    %v471 = vpop.f32.mrb[0].mxu0
    %v472 = vadd.f32 %v331, %v471
    %v473 = vpop.f32.mrb[0].mxu0
    %v474 = vpop.f32.mrb[0].mxu0
    %v475 = vadd.f32 %v331, %v474
    %v476 = vpop.f32.mrb[0].mxu0
    %477 = vdwg.mxu0
    %vm478 = vcmp.gt.f32.partialorder %v416, 0.0
    %vm479 = vcmp.gt.f32.partialorder %v419, 0.0
    %vm480 = vcmp.gt.f32.partialorder %v424, 0.0
    %vm481 = vcmp.gt.f32.partialorder %v427, 0.0
    %vm482 = vcmp.gt.f32.partialorder %v432, 0.0
    %vm483 = vcmp.gt.f32.partialorder %v435, 0.0
    %vm484 = vcmp.gt.f32.partialorder %v440, 0.0
    %vm485 = vcmp.gt.f32.partialorder %v443, 0.0
    %vm486 = vcmp.gt.f32.partialorder %v448, 0.0
    %vm487 = vcmp.gt.f32.partialorder %v451, 0.0
    %vm488 = vcmp.gt.f32.partialorder %v456, 0.0
    %vm489 = vcmp.gt.f32.partialorder %v459, 0.0
    %vm490 = vcmp.gt.f32.partialorder %v464, 0.0
    %vm491 = vcmp.gt.f32.partialorder %v467, 0.0
    %vm492 = vcmp.gt.f32.partialorder %v472, 0.0
    %vm493 = vcmp.gt.f32.partialorder %v475, 0.0
    %v494 = vmul.f32 %v416, 0.01
    %v495 = vmul.f32 %v419, 0.01
    %v496 = vmul.f32 %v424, 0.01
    %v497 = vmul.f32 %v427, 0.01
    %v498 = vmul.f32 %v432, 0.01
    %v499 = vmul.f32 %v435, 0.01
    %v500 = vmul.f32 %v440, 0.01
    %v501 = vmul.f32 %v443, 0.01
    %v502 = vmul.f32 %v448, 0.01
    %v503 = vmul.f32 %v451, 0.01
    %v504 = vmul.f32 %v456, 0.01
    %v505 = vmul.f32 %v459, 0.01
    %v506 = vmul.f32 %v464, 0.01
    %v507 = vmul.f32 %v467, 0.01
    %v508 = vmul.f32 %v472, 0.01
    %v509 = vmul.f32 %v475, 0.01
    %v510 = vsel %vm478, %v416, %v494
    %v511 = vsel %vm479, %v419, %v495
    %v512 = vsel %vm480, %v424, %v496
    %v513 = vsel %vm481, %v427, %v497
    %v514 = vsel %vm482, %v432, %v498
    %v515 = vsel %vm483, %v435, %v499
    %v516 = vsel %vm484, %v440, %v500
    %v517 = vsel %vm485, %v443, %v501
    %v518 = vsel %vm486, %v448, %v502
    %v519 = vsel %vm487, %v451, %v503
    %v520 = vsel %vm488, %v456, %v504
    %v521 = vsel %vm489, %v459, %v505
    %v522 = vsel %vm490, %v464, %v506
    %v523 = vsel %vm491, %v467, %v507
    %v524 = vsel %vm492, %v472, %v508
    %v525 = vsel %vm493, %v475, %v509
    %v526 = vpack.c.bf16 %v511, %v510
    %v527 = vpack.c.bf16 %v513, %v512
    %v528 = vpack.c.bf16 %v515, %v514
    %v529 = vpack.c.bf16 %v517, %v516
    %v530 = vpack.c.bf16 %v519, %v518
    %v531 = vpack.c.bf16 %v521, %v520
    %v532 = vpack.c.bf16 %v523, %v522
    %v533 = vpack.c.bf16 %v525, %v524
    %v534 = vld [vmem:[#allocation8] sm:$0xf]
    %v535 = vld [vmem:[#allocation8 + $0x4] sm:$0xf]
    %v536 = vld [vmem:[#allocation8 + $0x8] sm:$0xf]
    %v537 = vld [vmem:[#allocation8 + $0xc] sm:$0xf]
    %v538 = vld [vmem:[#allocation8 + $0x10] sm:$0xf]
    %v539 = vld [vmem:[#allocation8 + $0x14] sm:$0xf]
    %v540 = vld [vmem:[#allocation8 + $0x18] sm:$0xf]
    %v541 = vld [vmem:[#allocation8 + $0x1c] sm:$0xf]
    %v542 = vld [vmem:[#allocation8 + $0x20] sm:$0xf]
    %v543 = vld [vmem:[#allocation8 + $0x24] sm:$0xf]
    %v544 = vld [vmem:[#allocation8 + $0x28] sm:$0xf]
    %v545 = vld [vmem:[#allocation8 + $0x2c] sm:$0xf]
    %v546 = vld [vmem:[#allocation8 + $0x30] sm:$0xf]
    %v547 = vld [vmem:[#allocation8 + $0x34] sm:$0xf]
    %v548 = vld [vmem:[#allocation8 + $0x38] sm:$0xf]
    %v549 = vld [vmem:[#allocation8 + $0x3c] sm:$0xf]
    %v566 = vunpack.c.l.b16 %v534
    %v567 = vunpack.c.l.b16 %v535
    %v568 = vunpack.c.l.b16 %v536
    %v569 = vunpack.c.l.b16 %v537
    %v570 = vunpack.c.l.b16 %v538
    %v571 = vunpack.c.l.b16 %v539
    %v572 = vunpack.c.l.b16 %v540
    %v573 = vunpack.c.l.b16 %v541
    %v574 = vunpack.c.l.b16 %v542
    %v575 = vunpack.c.l.b16 %v543
    %v576 = vunpack.c.l.b16 %v544
    %v577 = vunpack.c.l.b16 %v545
    %v578 = vunpack.c.l.b16 %v546
    %v579 = vunpack.c.l.b16 %v547
    %v580 = vunpack.c.l.b16 %v548
    %v581 = vunpack.c.l.b16 %v549
    %v582 = vpack.c.b16 %v567, %v566
    %v583 = vpack.c.b16 %v569, %v568
    %v584 = vpack.c.b16 %v571, %v570
    %v585 = vpack.c.b16 %v573, %v572
    %v586 = vpack.c.b16 %v575, %v574
    %v587 = vpack.c.b16 %v577, %v576
    %v588 = vpack.c.b16 %v579, %v578
    %v589 = vpack.c.b16 %v581, %v580
    %598 = vmatprep.subr.bf16.mxu0 0
    %599 = vmatpush1.bf16.msra.mxu0 %v582
    %600 = vmatprep.subr.bf16.mxu0 0
    %601 = vmatpush1.bf16.msra.mxu0 %v583
    %602 = vmatprep.subr.bf16.mxu0 0
    %603 = vmatpush1.bf16.msra.mxu0 %v584
    %604 = vmatprep.subr.bf16.mxu0 0
    %605 = vmatpush1.bf16.msra.mxu0 %v585
    %606 = vmatprep.subr.bf16.mxu0 0
    %607 = vmatpush1.bf16.msra.mxu0 %v586
    %608 = vmatprep.subr.bf16.mxu0 0
    %609 = vmatpush1.bf16.msra.mxu0 %v587
    %610 = vmatprep.subr.bf16.mxu0 0
    %611 = vmatpush1.bf16.msra.mxu0 %v588
    %612 = vmatprep.subr.bf16.mxu0 0
    %613 = vmatpush1.bf16.msra.mxu0 %v589
    %614 = vmatprep.subr.bf16.mxu0 0
    %615 = vmatpush1.bf16.msra.mxu0 0
    %616 = vmatprep.subr.bf16.mxu0 0
    %617 = vmatpush1.bf16.msra.mxu0 0
    %618 = vmatprep.subr.bf16.mxu0 0
    %619 = vmatpush1.bf16.msra.mxu0 0
    %620 = vmatprep.subr.bf16.mxu0 0
    %621 = vmatpush1.bf16.msra.mxu0 0
    %622 = vmatprep.subr.bf16.mxu0 0
    %623 = vmatpush1.bf16.msra.mxu0 0
    %624 = vmatprep.subr.bf16.mxu0 0
    %625 = vmatpush1.bf16.msra.mxu0 0
    %626 = vmatprep.subr.bf16.mxu0 0
    %627 = vmatpush1.bf16.msra.mxu0 0
    %628 = vmatprep.subr.bf16.mxu0 0
    %629 = vmatpush1.bf16.msra.mxu0 0
    %630 = vmatprep.mubr.bf16.mxu0 0
    %631 = vmatmul.mubr.bf16.gmra.mrb[0].mxu0 %v526
    %v632 = vpop.f32.mrb[0].mxu0
    %v633 = vadd.f32 0.0, %v632
    %v634 = vpop.f32.mrb[0].mxu0
    %v635 = vpop.f32.mrb[0].mxu0
    %v636 = vadd.f32 0.0, %v635
    %v637 = vpop.f32.mrb[0].mxu0
    %638 = vmatprep.mubr.bf16.mxu0 0
    %639 = vmatmul.mubr.bf16.gmra.mrb[0].mxu0 %v527
    %v640 = vpop.f32.mrb[0].mxu0
    %v641 = vadd.f32 0.0, %v640
    %v642 = vpop.f32.mrb[0].mxu0
    %v643 = vpop.f32.mrb[0].mxu0
    %v644 = vadd.f32 0.0, %v643
    %v645 = vpop.f32.mrb[0].mxu0
    %646 = vmatprep.mubr.bf16.mxu0 0
    %647 = vmatmul.mubr.bf16.gmra.mrb[0].mxu0 %v528
    %v648 = vpop.f32.mrb[0].mxu0
    %v649 = vadd.f32 0.0, %v648
    %v650 = vpop.f32.mrb[0].mxu0
    %v651 = vpop.f32.mrb[0].mxu0
    %v652 = vadd.f32 0.0, %v651
    %v653 = vpop.f32.mrb[0].mxu0
    %654 = vmatprep.mubr.bf16.mxu0 0
    %655 = vmatmul.mubr.bf16.gmra.mrb[0].mxu0 %v529
    %v656 = vpop.f32.mrb[0].mxu0
    %v657 = vadd.f32 0.0, %v656
    %v658 = vpop.f32.mrb[0].mxu0
    %v659 = vpop.f32.mrb[0].mxu0
    %v660 = vadd.f32 0.0, %v659
    %v661 = vpop.f32.mrb[0].mxu0
    %662 = vmatprep.mubr.bf16.mxu0 0
    %663 = vmatmul.mubr.bf16.gmra.mrb[0].mxu0 %v530
    %v664 = vpop.f32.mrb[0].mxu0
    %v665 = vadd.f32 0.0, %v664
    %v666 = vpop.f32.mrb[0].mxu0
    %v667 = vpop.f32.mrb[0].mxu0
    %v668 = vadd.f32 0.0, %v667
    %v669 = vpop.f32.mrb[0].mxu0
    %670 = vmatprep.mubr.bf16.mxu0 0
    %671 = vmatmul.mubr.bf16.gmra.mrb[0].mxu0 %v531
    %v672 = vpop.f32.mrb[0].mxu0
    %v673 = vadd.f32 0.0, %v672
    %v674 = vpop.f32.mrb[0].mxu0
    %v675 = vpop.f32.mrb[0].mxu0
    %v676 = vadd.f32 0.0, %v675
    %v677 = vpop.f32.mrb[0].mxu0
    %678 = vmatprep.mubr.bf16.mxu0 0
    %679 = vmatmul.mubr.bf16.gmra.mrb[0].mxu0 %v532
    %v680 = vpop.f32.mrb[0].mxu0
    %v681 = vadd.f32 0.0, %v680
    %v682 = vpop.f32.mrb[0].mxu0
    %v683 = vpop.f32.mrb[0].mxu0
    %v684 = vadd.f32 0.0, %v683
    %v685 = vpop.f32.mrb[0].mxu0
    %686 = vmatprep.mubr.bf16.mxu0 0
    %687 = vmatmul.mubr.bf16.gmra.mrb[0].mxu0 %v533
    %v688 = vpop.f32.mrb[0].mxu0
    %v689 = vadd.f32 0.0, %v688
    %v690 = vpop.f32.mrb[0].mxu0
    %v691 = vpop.f32.mrb[0].mxu0
    %v692 = vadd.f32 0.0, %v691
    %v693 = vpop.f32.mrb[0].mxu0
    %694 = vdwg.mxu0
    %v695 = vpack.c.bf16 %v636, %v633
    %v696 = vpack.c.bf16 %v644, %v641
    %v697 = vpack.c.bf16 %v652, %v649
    %v698 = vpack.c.bf16 %v660, %v657
    %v699 = vpack.c.bf16 %v668, %v665
    %v700 = vpack.c.bf16 %v676, %v673
    %v701 = vpack.c.bf16 %v684, %v681
    %v702 = vpack.c.bf16 %v692, %v689
    %v711 = vunpack.c.l.b16 %v695
    %v712 = vunpack.c.h.b16 %v695
    %v713 = vunpack.c.l.b16 %v696
    %v714 = vunpack.c.h.b16 %v696
    %v715 = vunpack.c.l.b16 %v697
    %v716 = vunpack.c.h.b16 %v697
    %v717 = vunpack.c.l.b16 %v698
    %v718 = vunpack.c.h.b16 %v698
    %v719 = vunpack.c.l.b16 %v699
    %v720 = vunpack.c.h.b16 %v699
    %v721 = vunpack.c.l.b16 %v700
    %v722 = vunpack.c.h.b16 %v700
    %v723 = vunpack.c.l.b16 %v701
    %v724 = vunpack.c.h.b16 %v701
    %v725 = vunpack.c.l.b16 %v702
    %v726 = vunpack.c.h.b16 %v702
    %v727 = vpack.c.b16 %v711, %v711
    %v728 = vpack.c.b16 %v712, %v712
    %v729 = vpack.c.b16 %v713, %v713
    %v730 = vpack.c.b16 %v714, %v714
    %v731 = vpack.c.b16 %v715, %v715
    %v732 = vpack.c.b16 %v716, %v716
    %v733 = vpack.c.b16 %v717, %v717
    %v734 = vpack.c.b16 %v718, %v718
    %v735 = vpack.c.b16 %v719, %v719
    %v736 = vpack.c.b16 %v720, %v720
    %v737 = vpack.c.b16 %v721, %v721
    %v738 = vpack.c.b16 %v722, %v722
    %v739 = vpack.c.b16 %v723, %v723
    %v740 = vpack.c.b16 %v724, %v724
    %v741 = vpack.c.b16 %v725, %v725
    %v742 = vpack.c.b16 %v726, %v726
    %759 = vst [vmem:[#allocation10] sm:$0xf] %v727
    %760 = vst [vmem:[#allocation10 + $0x4] sm:$0xf] %v728
    %761 = vst [vmem:[#allocation10 + $0x8] sm:$0xf] %v729
    %762 = vst [vmem:[#allocation10 + $0xc] sm:$0xf] %v730
    %763 = vst [vmem:[#allocation10 + $0x10] sm:$0xf] %v731
    %764 = vst [vmem:[#allocation10 + $0x14] sm:$0xf] %v732
    %765 = vst [vmem:[#allocation10 + $0x18] sm:$0xf] %v733
    %766 = vst [vmem:[#allocation10 + $0x1c] sm:$0xf] %v734
    %767 = vst [vmem:[#allocation10 + $0x20] sm:$0xf] %v735
    %768 = vst [vmem:[#allocation10 + $0x24] sm:$0xf] %v736
    %769 = vst [vmem:[#allocation10 + $0x28] sm:$0xf] %v737
    %770 = vst [vmem:[#allocation10 + $0x2c] sm:$0xf] %v738
    %771 = vst [vmem:[#allocation10 + $0x30] sm:$0xf] %v739
    %772 = vst [vmem:[#allocation10 + $0x34] sm:$0xf] %v740
    %773 = vst [vmem:[#allocation10 + $0x38] sm:$0xf] %v741
    %774 = vst [vmem:[#allocation10 + $0x3c] sm:$0xf] %v742
    // Predicated region
    $region38: #{tpu_custom_call.1} parent=1 // pred_check
      _
    $region39: #{tpu_custom_call.1} parent=1 // pred_check_branch
      %776 = sbr.rel (0) target = $region41
    $region40: #{tpu_custom_call.1} parent=1 // pred_region
      %s778 = ssub.s32 1024, 1024
      %779 = vsyncadd [#allocation4], %s778
      %s780 = sshll.u32 [#allocation10], 4
      %s781 = int_to_ptr.vmem [resolvable:$true] %s780
      %786 = dma.vmem_to_hbm [thread:$0]  %s781, 1024, %s5, [#allocation4], 64, 64, 4
    $region41: #{tpu_custom_call.1} parent=1 // pred_fallthru
      _
    // Predicated region
    $region42: #{tpu_custom_call.1} parent=1 // pred_check
      _
    $region43: #{tpu_custom_call.1} parent=1 // pred_check_branch
      %788 = sbr.rel (0) target = $region45
    $region44: #{tpu_custom_call.1} parent=1 // pred_region
      %789 = dma.done [#allocation4], 1024
    $region45: #{tpu_custom_call.1} parent=1 // pred_fallthru
      _
    %790 = vsyncpa [#allocation3], 1
    %791 = vsyncpa [#allocation6], 1
    %792 = vsyncpa [#allocation9], 1
    %793 = vsyncpa [#allocation4], 1

</llo_original>
